<compile_context>
chip_gen: v6e
topology: v6e:2x2x1
jax: 0.10.0
libtpu: 0.0.40
codegen_flags: <defaults>
</compile_context>

<pallas_src>
import jax
import jax.numpy as jnp
from jax.experimental import pallas as pl
from jax.experimental.pallas import tpu as pltpu


NUM_HEADS = 12
HEAD_DIM = 64
HIDDEN = NUM_HEADS * HEAD_DIM  # 768, as implied by the module


def _copy_kernel(x_ref, o_ref):
    # x_ref / o_ref: (TILE_ROWS, HIDDEN) -- pure lane-dense copy.
    o_ref[...] = x_ref[...]


def _pick_tile(rows: int, tile_rows: int) -> int:
    """Choose a row tile: VMEM-safe, (8,*)-aligned, and >=2 grid programs
    whenever rows >= 16 so both v7x TensorCores get work."""
    if rows <= 8:
        # Block equals the full row extent -> (8,128) rule satisfied trivially.
        return rows
    tile = min(tile_rows, rows)
    if rows <= tile:
        # Everything fit in one program: split into two, rounded up to a
        # multiple of 8 sublanes (Pallas masks the partial last block).
        half = -(-rows // 2)
        tile = min(-(-half // 8) * 8, rows)
    return tile


def m_forward(x43, x29, *, tile_rows=1024, materialize=True):
    """Replicates M.forward: returns x29.view(x43 + (12, 64))."""
    # Glue: tuple concatenation (operator.add on tuples).
    x44 = tuple(x43) + (NUM_HEADS, HEAD_DIM)

    B, S, H = x29.shape
    assert (B, S) == tuple(x43)
    assert H == HIDDEN

    if not materialize:
        # The optimal path: a contiguous reshape is metadata-only in XLA.
        return x29.reshape(x44)

    # Metadata-only flatten: (B, S, 768) -> (B*S, 768).
    rows = B * S
    x_flat = x29.reshape(rows, HIDDEN)

    tile = _pick_tile(rows, tile_rows)
    grid = (pl.cdiv(rows, tile),)

    nbytes = 2 * rows * HIDDEN * jnp.dtype(x29.dtype).itemsize  # read + write

    out_flat = pl.pallas_call(
        _copy_kernel,
        out_shape=jax.ShapeDtypeStruct((rows, HIDDEN), x29.dtype),
        grid_spec=pltpu.PrefetchScalarGridSpec(
            num_scalar_prefetch=0,
            grid=grid,
            in_specs=[pl.BlockSpec((tile, HIDDEN), lambda i: (i, 0))],
            out_specs=pl.BlockSpec((tile, HIDDEN), lambda i: (i, 0)),
        ),
        compiler_params=pltpu.CompilerParams(
            dimension_semantics=("parallel",),
        ),
        input_output_aliases={0: 0},
        cost_estimate=pl.CostEstimate(
            flops=0, transcendentals=0, bytes_accessed=nbytes),
    )(x_flat)

    # Metadata-only reshape to the view target (B, S, 12, 64).
    return out_flat.reshape(x44)


if __name__ == "__main__":
    # Small shapes consistent with the module: hidden must be 768 (= 12 * 64).
    B, S = 2, 16
    key = jax.random.PRNGKey(0)
    x29 = jax.random.normal(key, (B, S, HIDDEN), dtype=jnp.float32)
    x43 = (B, S)

    out = m_forward(x43, x29)            # Pallas kernel path
    out = jax.block_until_ready(out)

    out_view = m_forward(x43, x29, materialize=False)   # zero-copy path
    out_view = jax.block_until_ready(out_view)

    # Correctness check against the pure-JAX reference (reshape / view).
    ref = x29.reshape((B, S, NUM_HEADS, HEAD_DIM))
    assert out.shape == (B, S, NUM_HEADS, HEAD_DIM)
    assert out.dtype == x29.dtype
    assert jnp.array_equal(out, ref)
    assert jnp.array_equal(out_view, ref)

    print("KERNEL_OK")
</pallas_src>

<mosaic_0001>
module attributes {stable_mosaic.version = 11 : i64} {
  func.func @_copy_kernel(%arg0: i32, %arg1: memref<16x768xf32, #tpu.memory_space<vmem>>, %arg2: memref<16x768xf32, #tpu.memory_space<vmem>>) attributes {dimension_semantics = [#tpu.dimension_semantics<parallel>], iteration_bounds = array<i64: 2>, scalar_prefetch = 0 : i64, scratch_operands = 0 : i64, tpu.core_type = #tpu.core_type<tc>, window_params = [{transform_indices = @transform_0, window_bounds = array<i64: 16, 768>}, {transform_indices = @transform_1, window_bounds = array<i64: 16, 768>}]} {
    %c0 = arith.constant 0 : index
    %c0_0 = arith.constant 0 : index
    %0 = vector.load %arg1[%c0, %c0_0] : memref<16x768xf32, #tpu.memory_space<vmem>>, vector<16x768xf32>
    %c0_1 = arith.constant 0 : index
    %c0_2 = arith.constant 0 : index
    %1 = vector.load %arg2[%c0_1, %c0_2] : memref<16x768xf32, #tpu.memory_space<vmem>>, vector<16x768xf32>
    tpu.vector_store %arg2[%c0_1, %c0_2], %0 {strides = array<i32>} : memref<16x768xf32, #tpu.memory_space<vmem>>, vector<16x768xf32>,
    return
  }
  func.func @transform_0(%arg0: i32) -> (i32, i32) {
    %c0_i32 = arith.constant 0 : i32
    %c0_i32_0 = arith.constant 0 : i32
    return %arg0, %c0_i32 : i32, i32
  }
  func.func @transform_1(%arg0: i32) -> (i32, i32) {
    %c0_i32 = arith.constant 0 : i32
    %c0_i32_0 = arith.constant 0 : i32
    return %arg0, %c0_i32 : i32, i32
  }
}

</mosaic_0001>

<llo_original>
// kernel: tpu_custom_call.1
$region0: #{tpu_custom_call.1}
  #allocation0 [shape = 'u32[]', space=smem, size = 0x4, offset = 0x4, fixed_abs, tag = 'smem constant byte address 0x4 - core index']
  #allocation1 [shape = 'u32[144,128]{1,0:T(1,128)}', space=vmem, size = 0x12000, scoped, tag = 'internal scratch']
  %s0 = inlined_call_operand.hbm [shape: f32[32,768], index: 0, kind: input, shape index: {}, may-alias: {0,1}]
  %s1 = inlined_call_operand.hbm [shape: f32[32,768], index: 1, kind: output, shape index: {}, may-alias: {0,1}]
  %s2 = sld [smem:[#allocation0]]
  $region41: #{tpu_custom_call.1} parent=0
    _
  %s4 = ssub.s32 1, %s2
  %s5 = scalar_select 0, %s4, %s2
  $region1: #{tpu_custom_call.1} parent=0
    #allocation2 [shape = 'u8[98304]{0}', space=vmem, size = 0x18000, scoped, tag = 'input window, operand 0']
    #allocation3 [shape = 's32[2]{0}', space=sflag, size = 0x8, scoped, tag = 'scoped memory for tpu_custom_call.1']
    #allocation4 [shape = 's32[2]{0}', space=sflag, size = 0x8, scoped, tag = 'scoped memory for tpu_custom_call.1']
    #allocation5 [shape = 'u8[98304]{0}', space=vmem, size = 0x18000, scoped, tag = 'output window, operand 0']
    %6 = vsyncpa [#allocation3], 0
    %s7 = scalar_lea.sflag [#allocation3], 1
    %8 = vsyncpa %s7, 0
    %9 = vsyncpa [#allocation4], 0
    %s10 = scalar_lea.sflag [#allocation4], 1
    %11 = vsyncpa %s10, 0
    loop: start=0, step=1, limit=4
    $region2: #{tpu_custom_call.1} parent=1 // loop_pre_header
      _
    $region3: #{tpu_custom_call.1} parent=1 // loop_header
      %s13 = sphi 0, %s17
      %p14 = scmp.ge.s32.totalorder %s13, 4
      %s23 = sphi 0, %s25
      %s26 = sphi 0, %s23
      %s27 = sphi 0, %s26
      %s43 = sphi 0, %s27
      %s49 = sphi 0, %s51
      %s52 = sphi 0, %s49
      %s53 = sphi 0, %s52
      %s69 = sphi 0, %s53
    $region4: #{tpu_custom_call.1} parent=1 // loop_header_branch
      %16 = sbr.rel (%p14) target = $region8
    $region5: #{tpu_custom_call.1} parent=1 // loop_body
      %s18 = ssub.s32 %s13, 1
      %s19 = ssub.s32 %s13, 2
      %s20 = sadd.s32 %s13, 1
      %s21 = ssub.s32 %s13, %s20
      %p22 = scmp.eq.s32.totalorder %s21, 0
      %s24 = sadd.s32 %s23, 1
      %s25 = scalar_select %p22, %s23, %s24
      %p28 = pneg %p22
      %p29 = scmp.eq.s32.totalorder %s13, 1
      %p30 = por %p28, %p29
      %p31 = scmp.ne.s32.totalorder %s23, %s26
      %p32 = scmp.eq.s32.totalorder %s13, 0
      %p33 = por %p31, %p32
      %p34 = scmp.ne.s32.totalorder %s23, %s26
      %p35 = scmp.eq.s32.totalorder %s18, 1
      %p36 = por %p34, %p35
      %p37 = scmp.ne.s32.totalorder %s26, %s27
      %p38 = scmp.eq.s32.totalorder %s18, 0
      %p39 = por %p37, %p38
      %p40 = scmp.ne.s32.totalorder %s26, %s27
      %p41 = scmp.eq.s32.totalorder %s19, 1
      %p42 = por %p40, %p41
      %p44 = scmp.ne.s32.totalorder %s27, %s43
      %p45 = scmp.eq.s32.totalorder %s19, 0
      %p46 = por %p44, %p45
      %s47 = ssub.s32 %s13, %s20
      %p48 = scmp.eq.s32.totalorder %s47, 0
      %s50 = sadd.s32 %s49, 1
      %s51 = scalar_select %p48, %s49, %s50
      %p54 = pneg %p48
      %p55 = scmp.eq.s32.totalorder %s13, 1
      %p56 = por %p54, %p55
      %p57 = scmp.ne.s32.totalorder %s49, %s52
      %p58 = scmp.eq.s32.totalorder %s13, 0
      %p59 = por %p57, %p58
      %p60 = scmp.ne.s32.totalorder %s49, %s52
      %p61 = scmp.eq.s32.totalorder %s18, 1
      %p62 = por %p60, %p61
      %p63 = scmp.ne.s32.totalorder %s52, %s53
      %p64 = scmp.eq.s32.totalorder %s18, 0
      %p65 = por %p63, %p64
      %p66 = scmp.ne.s32.totalorder %s52, %s53
      %p67 = scmp.eq.s32.totalorder %s19, 1
      %p68 = por %p66, %p67
      %p70 = scmp.ne.s32.totalorder %s53, %s69
      %p71 = scmp.eq.s32.totalorder %s19, 0
      %p72 = por %p70, %p71
      %p73 = scmp.le.s32.totalorder 1, %s13
      %p74 = scmp.lt.s32.totalorder %s13, 3
      %p75 = pnand %p73, %p74
      %p76 = pneg %p75
      // Predicated region
      $region9: #{tpu_custom_call.1} parent=5 // pred_check
        _
      $region10: #{tpu_custom_call.1} parent=5 // pred_check_branch
        %78 = sbr.rel (%p75) target = $region12
      $region11: #{tpu_custom_call.1} parent=5 // pred_region
        %s79 = ssub.s32 %s13, 1
      $region12: #{tpu_custom_call.1} parent=5 // pred_fallthru
        _
      %p80 = scmp.lt.s32.totalorder %s13, 2
      // Predicated region
      $region13: #{tpu_custom_call.1} parent=5 // pred_check
        %p81 = pneg %p80
      $region14: #{tpu_custom_call.1} parent=5 // pred_check_branch
        %83 = sbr.rel (%p81) target = $region16
      $region15: #{tpu_custom_call.1} parent=5 // pred_region
        // Predicated region
        $region17: #{tpu_custom_call.1} parent=15 // pred_check
          %p84 = pneg %p33
        $region18: #{tpu_custom_call.1} parent=15 // pred_check_branch
          %86 = sbr.rel (%p84) target = $region20
        $region19: #{tpu_custom_call.1} parent=15 // pred_region
          %s87 = sand.u32 %s23, 1
          %s88 = scalar_lea.sflag [#allocation3], %s87
          %s89 = sand.u32 %s23, 1
          %s90 = smul.addr %s89, 96
          %s91 = scalar_lea.vmem [#allocation2], %s90
          %s92 = smul.u32 2, %s13
          %s94 = ssub.s32 1536, 1536
          %95 = vsyncadd %s88, %s94
          %s96 = smul.addr %s92, 6
          %s97 = smul.addr %s96, 128
          %s98 = scalar_lea.hbm %s0, %s97
          %s99 = sshll.u32 %s91, 4
          %s100 = int_to_ptr.vmem [resolvable:$true] %s99
          %105 = dma.hbm_to_vmem [thread:$0]  %s98, 1536, %s100, %s88, 768, 768, 48
        $region20: #{tpu_custom_call.1} parent=15 // pred_fallthru
          _
      $region16: #{tpu_custom_call.1} parent=5 // pred_fallthru
        _
      %p106 = scmp.le.s32.totalorder 1, %s13
      %p107 = scmp.lt.s32.totalorder %s13, 3
      %p108 = pnand %p106, %p107
      %p109 = pneg %p108
      // Predicated region
      $region21: #{tpu_custom_call.1} parent=5 // pred_check
        _
      $region22: #{tpu_custom_call.1} parent=5 // pred_check_branch
        %111 = sbr.rel (%p108) target = $region24
      $region23: #{tpu_custom_call.1} parent=5 // pred_region
        %s112 = ssub.s32 %s13, 1
        %s113 = sand.u32 %s26, 1
        %s114 = scalar_lea.sflag [#allocation3], %s113
        %s115 = sand.u32 %s26, 1
        %s116 = smul.addr %s115, 96
        %s117 = scalar_lea.vmem [#allocation2], %s116
        // Predicated region
        $region25: #{tpu_custom_call.1} parent=23 // pred_check
          %p118 = pneg %p39
        $region26: #{tpu_custom_call.1} parent=23 // pred_check_branch
          %120 = sbr.rel (%p118) target = $region28
        $region27: #{tpu_custom_call.1} parent=23 // pred_region
          %121 = dma.done %s114, 1536
        $region28: #{tpu_custom_call.1} parent=23 // pred_fallthru
          _
        %s122 = sand.u32 %s26, 1
        %s123 = scalar_lea.sflag [#allocation3], %s122
        %s124 = sand.u32 %s26, 1
        %s125 = smul.addr %s124, 96
        %s126 = scalar_lea.vmem [#allocation2], %s125
        %p127 = pneg %p39
        %p128 = pneg %p36
        %p129 = pneg %p65
        %p130 = pneg %p62
        %s131 = sand.u32 %s52, 1
        %s132 = scalar_lea.sflag [#allocation4], %s131
        %s133 = sand.u32 %s52, 1
        %s134 = smul.addr %s133, 96
        %s135 = scalar_lea.vmem [#allocation5], %s134
        %s136 = smul.u32 2, %s18
        %s137 = smul.u32 2, %s18
        %v138 = vld [vmem:[%s117] sm:$0xff]
        %v139 = vld [vmem:[%s117 + $0x8] sm:$0xff]
        %v140 = vld [vmem:[%s117 + $0x10] sm:$0xff]
        %v141 = vld [vmem:[%s117 + $0x18] sm:$0xff]
        %v142 = vld [vmem:[%s117 + $0x20] sm:$0xff]
        %v143 = vld [vmem:[%s117 + $0x28] sm:$0xff]
        %v144 = vld [vmem:[%s117 + $0x30] sm:$0xff]
        %v145 = vld [vmem:[%s117 + $0x38] sm:$0xff]
        %v146 = vld [vmem:[%s117 + $0x40] sm:$0xff]
        %v147 = vld [vmem:[%s117 + $0x48] sm:$0xff]
        %v148 = vld [vmem:[%s117 + $0x50] sm:$0xff]
        %v149 = vld [vmem:[%s117 + $0x58] sm:$0xff]
        %150 = vst [vmem:[%s135] sm:$0xff] %v138
        %151 = vst [vmem:[%s135 + $0x8] sm:$0xff] %v139
        %152 = vst [vmem:[%s135 + $0x10] sm:$0xff] %v140
        %153 = vst [vmem:[%s135 + $0x18] sm:$0xff] %v141
        %154 = vst [vmem:[%s135 + $0x20] sm:$0xff] %v142
        %155 = vst [vmem:[%s135 + $0x28] sm:$0xff] %v143
        %156 = vst [vmem:[%s135 + $0x30] sm:$0xff] %v144
        %157 = vst [vmem:[%s135 + $0x38] sm:$0xff] %v145
        %158 = vst [vmem:[%s135 + $0x40] sm:$0xff] %v146
        %159 = vst [vmem:[%s135 + $0x48] sm:$0xff] %v147
        %160 = vst [vmem:[%s135 + $0x50] sm:$0xff] %v148
        %161 = vst [vmem:[%s135 + $0x58] sm:$0xff] %v149
        %s162 = sand.u32 %s52, 1
        %s163 = scalar_lea.sflag [#allocation4], %s162
        %s164 = sand.u32 %s52, 1
        %s165 = smul.addr %s164, 96
        %s166 = scalar_lea.vmem [#allocation5], %s165
        // Predicated region
        $region29: #{tpu_custom_call.1} parent=23 // pred_check
          %p167 = pneg %p62
        $region30: #{tpu_custom_call.1} parent=23 // pred_check_branch
          %169 = sbr.rel (%p167) target = $region32
        $region31: #{tpu_custom_call.1} parent=23 // pred_region
          %s170 = smul.u32 2, %s18
          %s172 = ssub.s32 1536, 1536
          %173 = vsyncadd %s163, %s172
          %s174 = smul.addr %s170, 6
          %s175 = smul.addr %s174, 128
          %s176 = scalar_lea.hbm %s1, %s175
          %s177 = sshll.u32 %s166, 4
          %s178 = int_to_ptr.vmem [resolvable:$true] %s177
          %183 = dma.vmem_to_hbm [thread:$0]  %s178, 1536, %s176, %s163, 768, 768, 48
        $region32: #{tpu_custom_call.1} parent=23 // pred_fallthru
          _
      $region24: #{tpu_custom_call.1} parent=5 // pred_fallthru
        _
      %p184 = scmp.le.s32.totalorder 2, %s13
      // Predicated region
      $region33: #{tpu_custom_call.1} parent=5 // pred_check
        %p185 = pneg %p184
      $region34: #{tpu_custom_call.1} parent=5 // pred_check_branch
        %187 = sbr.rel (%p185) target = $region36
      $region35: #{tpu_custom_call.1} parent=5 // pred_region
        %s188 = ssub.s32 %s13, 2
        // Predicated region
        $region37: #{tpu_custom_call.1} parent=35 // pred_check
          %p189 = pneg %p68
        $region38: #{tpu_custom_call.1} parent=35 // pred_check_branch
          %191 = sbr.rel (%p189) target = $region40
        $region39: #{tpu_custom_call.1} parent=35 // pred_region
          %s192 = sand.u32 %s53, 1
          %s193 = scalar_lea.sflag [#allocation4], %s192
          %s194 = sand.u32 %s53, 1
          %s195 = smul.addr %s194, 96
          %s196 = scalar_lea.vmem [#allocation5], %s195
          %197 = dma.done %s193, 1536
        $region40: #{tpu_custom_call.1} parent=35 // pred_fallthru
          _
      $region36: #{tpu_custom_call.1} parent=5 // pred_fallthru
        _
    $region6: #{tpu_custom_call.1} parent=1 // loop_footer
      %s17 = sadd.s32 1, %s13
    $region7: #{tpu_custom_call.1} parent=1 // loop_footer_branch
      %12 = sbr.rel target = $region3
    $region8: #{tpu_custom_call.1} parent=1 // loop_exit
      _
    %198 = vsyncpa [#allocation3], 1
    %s199 = scalar_lea.sflag [#allocation3], 1
    %200 = vsyncpa %s199, 1
    %201 = vsyncpa [#allocation4], 1
    %s202 = scalar_lea.sflag [#allocation4], 1
    %203 = vsyncpa %s202, 1

</llo_original>
